<compile_context>
chip_gen: v7x
topology: tpu7x:2x2x1
jax: 0.10.0
libtpu: 0.0.40
codegen_flags: <defaults>
</compile_context>

<pallas_src>
from functools import partial

import jax
import jax.numpy as jnp
from jax.experimental import pallas as pl
from jax.experimental.pallas import tpu as pltpu

NORM_EPS = 1e-5


def _round_up(x, m):
    return (x + m - 1) // m * m


# ----------------------------- Pallas kernel --------------------------------

def _conv_gemm_kernel(a_ref, b_ref, t_ref, o_ref, acc_ref, *, n_groups, relu):
    """Group-packed GEMM with fused (folded eval-BN) shift + ReLU.

    a_ref  : (G, tm, tk)   bf16  im2col activations (group-major K)
    b_ref  : (G, tk, Og)   bf16  weights with BN scale folded in
    t_ref  : (G, 1,  Og)   f32   BN shift (beta - mean * scale)
    o_ref  : (tm, G*Og)    f32   lane-dense output tile
    acc_ref: (G, tm, Og)   f32   accumulator scratch, persistent across K steps
    """
    k = pl.program_id(1)

    @pl.when(k == 0)
    def _init():
        acc_ref[...] = jnp.zeros_like(acc_ref)

    # One MXU matmul per group, accumulated in f32.
    for g in range(n_groups):
        acc_ref[g] = acc_ref[g] + jnp.dot(
            a_ref[g], b_ref[g], preferred_element_type=jnp.float32)

    @pl.when(k == pl.num_programs(1) - 1)
    def _finalize():
        outs = []
        for g in range(n_groups):
            out_g = acc_ref[g] + t_ref[g]          # folded-BN shift
            if relu:
                out_g = jnp.maximum(out_g, 0.0)
            outs.append(out_g)
        # Single lane-dense (tm, G*Og) store.
        o_ref[...] = outs[0] if n_groups == 1 else jnp.concatenate(outs, axis=-1)


def _grouped_matmul_bn_act(a, b, shift, *, relu, tm, tk):
    """a:(G,Mp,Kp) bf16, b:(G,Kp,Og) bf16, shift:(G,1,Og) f32 -> (Mp, G*Og) f32."""
    G, Mp, Kp = a.shape
    Og = b.shape[2]
    grid = (Mp // tm, Kp // tk)
    return pl.pallas_call(
        partial(_conv_gemm_kernel, n_groups=G, relu=relu),
        out_shape=jax.ShapeDtypeStruct((Mp, G * Og), jnp.float32),
        grid=grid,
        in_specs=[
            pl.BlockSpec((G, tm, tk), lambda m, k: (0, m, k)),
            pl.BlockSpec((G, tk, Og), lambda m, k: (0, k, 0)),
            pl.BlockSpec((G, 1, Og), lambda m, k: (0, 0, 0)),
        ],
        out_specs=pl.BlockSpec((tm, G * Og), lambda m, k: (m, 0)),
        scratch_shapes=[pltpu.VMEM((G, tm, Og), jnp.float32)],
        compiler_params=pltpu.CompilerParams(
            dimension_semantics=("parallel", "arbitrary")),
    )(a, b, shift)


# ----------------------------- conv plumbing --------------------------------

def _im2col(x, k, stride, pad):
    """x: (B, H, W, C) -> patches (B, Ho, Wo, k*k, C)."""
    xp = jnp.pad(x, ((0, 0), (pad, pad), (pad, pad), (0, 0)))
    _, Hp, Wp, _ = xp.shape
    Ho = (Hp - k) // stride + 1
    Wo = (Wp - k) // stride + 1
    cols = []
    for i in range(k):
        for j in range(k):
            cols.append(xp[:, i:i + stride * Ho:stride,
                            j:j + stride * Wo:stride, :])
    return jnp.stack(cols, axis=3), Ho, Wo


def conv_bn_relu(x_nchw, weight, gamma, beta, running_mean, running_var, *,
                 stride, groups=1, eps=NORM_EPS, relu=True,
                 tm_max=256, tk_max=512):
    """Forward of PyTorch ConvBNReLU (eval-mode BN). NCHW in, NCHW out.

    weight: (O, Cin//groups, k, k) PyTorch OIHW layout; padding=1, bias=False.
    """
    O, Cg, kh, kw = weight.shape
    assert kh == kw, "square kernels only"
    ksz = kh
    G = groups
    Og = O // G

    # Fold eval-mode BN:  y = conv(x) * scale + shift
    scale = gamma / jnp.sqrt(running_var + eps)            # (O,)
    shift = beta - running_mean * scale                    # (O,)

    # NCHW -> NHWC; bf16 so the im2col intermediate and MXU operands are half-width.
    x = jnp.transpose(x_nchw, (0, 2, 3, 1)).astype(jnp.bfloat16)
    B = x.shape[0]

    patches, Ho, Wo = _im2col(x, ksz, stride, pad=1)       # (B,Ho,Wo,k*k,Cin) bf16
    M = B * Ho * Wo
    Kg = ksz * ksz * Cg

    # Group-major GEMM operands.
    a = patches.reshape(M, ksz * ksz, G, Cg).transpose(2, 0, 1, 3).reshape(G, M, Kg)

    w = weight.astype(jnp.float32) * scale[:, None, None, None]   # fold BN scale
    b = w.reshape(G, Og, Cg, kh, kw).transpose(0, 3, 4, 2, 1).reshape(G, Kg, Og)
    t = shift.reshape(G, 1, Og).astype(jnp.float32)

    # Tile sizes: M tiled (mult of 8), K padded/tiled to multiples of 128.
    tm = min(tm_max, _round_up(M, 8))
    Mp = _round_up(M, tm)
    Kp = _round_up(Kg, 128)
    if Kp <= tk_max:
        tk = Kp
    else:
        tk = tk_max
        Kp = _round_up(Kg, tk)

    a = jnp.pad(a, ((0, 0), (0, Mp - M), (0, Kp - Kg)))
    b = jnp.pad(b, ((0, 0), (0, Kp - Kg), (0, 0))).astype(jnp.bfloat16)

    out = _grouped_matmul_bn_act(a, b, t, relu=relu, tm=tm, tk=tk)   # (Mp, O)
    out = out[:M].reshape(B, Ho, Wo, O)
    return jnp.transpose(out, (0, 3, 1, 2))                # back to NCHW


# ----------------------------- module wrapper --------------------------------

class ConvBNReLU:
    """JAX/Pallas port of the PyTorch ConvBNReLU module (inference mode)."""

    def __init__(self, key, in_channels, out_channels, kernel_size, stride, groups=1):
        k0, k1, k2, k3, k4 = jax.random.split(key, 5)
        cg = in_channels // groups
        fan_in = kernel_size * kernel_size * cg
        self.weight = jax.random.normal(
            k0, (out_channels, cg, kernel_size, kernel_size),
            jnp.float32) * (2.0 / fan_in) ** 0.5
        self.gamma = 1.0 + 0.1 * jax.random.normal(k1, (out_channels,), jnp.float32)
        self.beta = 0.1 * jax.random.normal(k2, (out_channels,), jnp.float32)
        self.running_mean = 0.1 * jax.random.normal(k3, (out_channels,), jnp.float32)
        self.running_var = 0.5 + jax.random.uniform(k4, (out_channels,), jnp.float32)
        self.stride = stride
        self.groups = groups

    def __call__(self, x_nchw):
        return conv_bn_relu(x_nchw, self.weight, self.gamma, self.beta,
                            self.running_mean, self.running_var,
                            stride=self.stride, groups=self.groups)

    def reference(self, x_nchw):
        """Pure-JAX f32 reference of the PyTorch forward (for validation)."""
        y = jax.lax.conv_general_dilated(
            jnp.transpose(x_nchw, (0, 2, 3, 1)),
            jnp.transpose(self.weight, (2, 3, 1, 0)),
            window_strides=(self.stride, self.stride),
            padding=((1, 1), (1, 1)),
            dimension_numbers=("NHWC", "HWIO", "NHWC"),
            feature_group_count=self.groups)
        scale = self.gamma / jnp.sqrt(self.running_var + NORM_EPS)
        y = y * scale + (self.beta - self.running_mean * scale)
        y = jnp.maximum(y, 0.0)
        return jnp.transpose(y, (0, 3, 1, 2))


# ----------------------------------- demo ------------------------------------

if __name__ == "__main__":
    root = jax.random.PRNGKey(0)
    kx1, km1, kx2, km2 = jax.random.split(root, 4)

    def rel_err(a, b):
        return float(jnp.linalg.norm(a - b) / (jnp.linalg.norm(b) + 1e-6))

    # Case 1: 3x3, stride 1, groups 1  (stem-style ConvBNReLU)
    x1 = jax.random.normal(kx1, (2, 16, 16, 16), jnp.float32)   # NCHW
    mod1 = ConvBNReLU(km1, in_channels=16, out_channels=64, kernel_size=3, stride=1)
    out1 = jax.block_until_ready(mod1(x1))
    ref1 = mod1.reference(x1)

    # Case 2: 3x3, stride 2, groups 2  (grouped / downsampling ConvBNReLU)
    x2 = jax.random.normal(kx2, (2, 32, 16, 16), jnp.float32)   # NCHW
    mod2 = ConvBNReLU(km2, in_channels=32, out_channels=64, kernel_size=3,
                      stride=2, groups=2)
    out2 = jax.block_until_ready(mod2(x2))
    ref2 = mod2.reference(x2)

    assert out1.shape == (2, 64, 16, 16), out1.shape
    assert out2.shape == (2, 64, 8, 8), out2.shape
    assert bool(jnp.all(jnp.isfinite(out1))) and bool(jnp.all(jnp.isfinite(out2)))
    e1, e2 = rel_err(out1, ref1), rel_err(out2, ref2)
    # bf16 MXU operands with f32 accumulation -> expect <~1% relative error.
    assert e1 < 5e-2 and e2 < 5e-2, (e1, e2)
    print("KERNEL_OK")
</pallas_src>

<mosaic_0001>
module attributes {stable_mosaic.version = 11 : i64} {
  func.func @_conv_gemm_kernel(%arg0: i32, %arg1: i32, %arg2: memref<1x256x256xbf16, #tpu.memory_space<vmem>>, %arg3: memref<1x256x64xbf16, #tpu.memory_space<vmem>>, %arg4: memref<1x1x64xf32, #tpu.memory_space<vmem>>, %arg5: memref<256x64xf32, #tpu.memory_space<vmem>>, %arg6: memref<1x256x64xf32, #tpu.memory_space<vmem>>) attributes {dimension_semantics = [#tpu.dimension_semantics<parallel>, #tpu.dimension_semantics<arbitrary>], iteration_bounds = array<i64: 2, 1>, scalar_prefetch = 0 : i64, scratch_operands = 1 : i64, tpu.core_type = #tpu.core_type<tc>, window_params = [{transform_indices = @transform_0, window_bounds = array<i64: 1, 256, 256>}, {transform_indices = @transform_1, window_bounds = array<i64: 1, 256, 64>}, {pipeline_mode = #tpu.pipeline_mode<synchronous>, transform_indices = @transform_2, window_bounds = array<i64: 1, 1, 64>}, {transform_indices = @transform_3, window_bounds = array<i64: 256, 64>}]} {
    %c0_i32 = arith.constant 0 : i32
    %0 = arith.cmpi eq, %arg1, %c0_i32 : i32
    %1 = arith.extui %0 : i1 to i32
    %c0_i32_0 = arith.constant 0 : i32
    %2 = arith.cmpi ne, %1, %c0_i32_0 : i32
    scf.if %2 {
      %cst_14 = arith.constant 0.000000e+00 : f32
      %17 = vector.broadcast %cst_14 : f32 to vector<1x256x64xf32>
      %c0_15 = arith.constant 0 : index
      %c0_16 = arith.constant 0 : index
      %c0_17 = arith.constant 0 : index
      %18 = vector.load %arg6[%c0_15, %c0_16, %c0_17] : memref<1x256x64xf32, #tpu.memory_space<vmem>>, vector<1x256x64xf32>
      tpu.vector_store %arg6[%c0_15, %c0_16, %c0_17], %17 {strides = array<i32>} : memref<1x256x64xf32, #tpu.memory_space<vmem>>, vector<1x256x64xf32>,
    } else {
    }
    %c0 = arith.constant 0 : index
    %c0_1 = arith.constant 0 : index
    %c0_2 = arith.constant 0 : index
    %3 = vector.load %arg6[%c0, %c0_1, %c0_2] : memref<1x256x64xf32, #tpu.memory_space<vmem>>, vector<1x256x64xf32>
    %4 = vector.shape_cast %3 : vector<1x256x64xf32> to vector<256x64xf32>
    %c0_3 = arith.constant 0 : index
    %c0_4 = arith.constant 0 : index
    %c0_5 = arith.constant 0 : index
    %5 = vector.load %arg2[%c0_3, %c0_4, %c0_5] : memref<1x256x256xbf16, #tpu.memory_space<vmem>>, vector<1x256x256xbf16>
    %6 = vector.shape_cast %5 : vector<1x256x256xbf16> to vector<256x256xbf16>
    %c0_6 = arith.constant 0 : index
    %c0_7 = arith.constant 0 : index
    %c0_8 = arith.constant 0 : index
    %7 = vector.load %arg3[%c0_6, %c0_7, %c0_8] : memref<1x256x64xbf16, #tpu.memory_space<vmem>>, vector<1x256x64xbf16>
    %8 = vector.shape_cast %7 : vector<1x256x64xbf16> to vector<256x64xbf16>
    %cst = arith.constant dense<0.000000e+00> : vector<256x64xf32>
    %9 = tpu.matmul %6, %8, %cst {dimension_numbers = #tpu.dot_dimension_numbers<[1], [0], [0], [1], [0, 0, 1, 1], [], []>} : vector<256x256xbf16>, vector<256x64xbf16>, vector<256x64xf32> -> vector<256x64xf32>
    %10 = arith.addf %4, %9 : vector<256x64xf32>
    %c0_9 = arith.constant 0 : index
    %c0_10 = arith.constant 0 : index
    %c0_11 = arith.constant 0 : index
    %11 = vector.load %arg6[%c0_9, %c0_10, %c0_11] : memref<1x256x64xf32, #tpu.memory_space<vmem>>, vector<1x256x64xf32>
    %12 = vector.shape_cast %11 : vector<1x256x64xf32> to vector<256x64xf32>
    %13 = vector.shape_cast %10 : vector<256x64xf32> to vector<1x256x64xf32>
    tpu.vector_store %arg6[%c0_9, %c0_10, %c0_11], %13 {strides = array<i32>} : memref<1x256x64xf32, #tpu.memory_space<vmem>>, vector<1x256x64xf32>,
    %c0_i32_12 = arith.constant 0 : i32
    %14 = arith.cmpi eq, %arg1, %c0_i32_12 : i32
    %15 = arith.extui %14 : i1 to i32
    %c0_i32_13 = arith.constant 0 : i32
    %16 = arith.cmpi ne, %15, %c0_i32_13 : i32
    scf.if %16 {
      %c0_14 = arith.constant 0 : index
      %c0_15 = arith.constant 0 : index
      %c0_16 = arith.constant 0 : index
      %17 = vector.load %arg6[%c0_14, %c0_15, %c0_16] : memref<1x256x64xf32, #tpu.memory_space<vmem>>, vector<1x256x64xf32>
      %18 = vector.shape_cast %17 : vector<1x256x64xf32> to vector<256x64xf32>
      %c0_17 = arith.constant 0 : index
      %c0_18 = arith.constant 0 : index
      %c0_19 = arith.constant 0 : index
      %19 = vector.load %arg4[%c0_17, %c0_18, %c0_19] : memref<1x1x64xf32, #tpu.memory_space<vmem>>, vector<1x1x64xf32>
      %20 = vector.shape_cast %19 : vector<1x1x64xf32> to vector<1x64xf32>
      %21 = vector.broadcast %20 : vector<1x64xf32> to vector<256x64xf32>
      %22 = arith.addf %18, %21 : vector<256x64xf32>
      %cst_20 = arith.constant 0.000000e+00 : f32
      %23 = vector.broadcast %cst_20 : f32 to vector<256x64xf32>
      %24 = arith.maximumf %22, %23 : vector<256x64xf32>
      %c0_21 = arith.constant 0 : index
      %c0_22 = arith.constant 0 : index
      %25 = vector.load %arg5[%c0_21, %c0_22] : memref<256x64xf32, #tpu.memory_space<vmem>>, vector<256x64xf32>
      tpu.vector_store %arg5[%c0_21, %c0_22], %24 {strides = array<i32>} : memref<256x64xf32, #tpu.memory_space<vmem>>, vector<256x64xf32>,
    } else {
    }
    return
  }
  func.func @transform_0(%arg0: i32, %arg1: i32) -> (i32, i32, i32) {
    %c0_i32 = arith.constant 0 : i32
    %c0_i32_0 = arith.constant 0 : i32
    return %c0_i32, %arg0, %arg1 : i32, i32, i32
  }
  func.func @transform_1(%arg0: i32, %arg1: i32) -> (i32, i32, i32) {
    %c0_i32 = arith.constant 0 : i32
    %c0_i32_0 = arith.constant 0 : i32
    %c0_i32_1 = arith.constant 0 : i32
    return %c0_i32, %arg1, %c0_i32_0 : i32, i32, i32
  }
  func.func @transform_2(%arg0: i32, %arg1: i32) -> (i32, i32, i32) {
    %c0_i32 = arith.constant 0 : i32
    %c0_i32_0 = arith.constant 0 : i32
    %c0_i32_1 = arith.constant 0 : i32
    %c0_i32_2 = arith.constant 0 : i32
    return %c0_i32, %c0_i32_0, %c0_i32_1 : i32, i32, i32
  }
  func.func @transform_3(%arg0: i32, %arg1: i32) -> (i32, i32) {
    %c0_i32 = arith.constant 0 : i32
    %c0_i32_0 = arith.constant 0 : i32
    return %arg0, %c0_i32 : i32, i32
  }
}

</mosaic_0001>

<llo_original>
// kernel: tpu_custom_call.1
$region0: #{tpu_custom_call.1}
  #allocation0 [shape = 'u32[]', space=smem, size = 0x4, offset = 0x4, fixed_abs, tag = 'smem constant byte address 0x4 - core index']
  #allocation1 [shape = 'u32[144,128]{1,0:T(1,128)}', space=vmem, size = 0x12000, scoped, tag = 'internal scratch']
  #allocation2 [shape = 'f32[1,256,64]{2,1,0:T(8,128)}', space=vmem, size = 0x20000, scoped, tag = 'scratch operand']
  %s0 = inlined_call_operand.hbm [shape: bf16[1,512,256], index: 0, kind: input, shape index: {}]
  %s1 = inlined_call_operand.vmem [shape: bf16[1,256,64], index: 1, kind: input, shape index: {}]
  %s2 = inlined_call_operand.vmem [shape: f32[1,1,64], index: 2, kind: input, shape index: {}]
  %s3 = inlined_call_operand.vmem [shape: f32[512,64], index: 3, kind: output, shape index: {}]
  %s4 = sld [smem:[#allocation0]]
  $region57: #{tpu_custom_call.1} parent=0
    _
  %s6 = ssub.s32 1, %s4
  %s7 = scalar_select 0, %s6, %s4
  $region1: #{tpu_custom_call.1} parent=0
    #allocation3 [shape = 'u8[262144]{0}', space=vmem, size = 0x40000, scoped, tag = 'input window, operand 0']
    #allocation4 [shape = 's32[2]{0}', space=sflag, size = 0x8, scoped, tag = 'scoped memory for tpu_custom_call.1']
    %8 = vsyncpa [#allocation4], 0
    %s9 = scalar_lea.sflag [#allocation4], 1
    %10 = vsyncpa %s9, 0
    loop: start=0, step=1, limit=4
    $region2: #{tpu_custom_call.1} parent=1 // loop_pre_header
      _
    $region3: #{tpu_custom_call.1} parent=1 // loop_header
      %s12 = sphi 0, %s16
      %p13 = scmp.ge.s32.totalorder %s12, 4
      %s19 = sphi 0, %s31
      %s20 = sphi 0, %s27
      %s21 = sphi 0, %s19
      %s22 = sphi 0, %s20
      %s23 = sphi 0, %s21
      %s24 = sphi 0, %s22
      %s36 = sphi 0, %s38
      %s39 = sphi 0, %s36
      %s40 = sphi 0, %s39
      %s56 = sphi 0, %s40
      %s62 = sphi 0, %s64
      %s65 = sphi 0, %s62
      %s66 = sphi 0, %s65
      %s82 = sphi 0, %s66
      %s86 = sphi 0, %s86
      %s88 = sphi 0, %s86
      %s89 = sphi 0, %s88
      %s103 = sphi 0, %s89
      %s109 = sphi 0, %s111
      %s112 = sphi 0, %s109
      %s113 = sphi 0, %s112
      %s129 = sphi 0, %s113
    $region4: #{tpu_custom_call.1} parent=1 // loop_header_branch
      %15 = sbr.rel (%p13) target = $region8
    $region5: #{tpu_custom_call.1} parent=1 // loop_body
      %s17 = ssub.s32 %s12, 1
      %s18 = ssub.s32 %s12, 2
      %s25 = sadd.s32 1, %s20
      %p26 = scmp.ge.s32.totalorder %s25, 1
      %s27 = scalar_select %p26, 0, %s25
      %s28 = sadd.s32 1, %s19
      %s29 = scalar_select %p26, %s28, %s19
      %p30 = scmp.ge.s32.totalorder %s29, 2
      %s31 = scalar_select %p30, 0, %s29
      %s32 = ssub.s32 %s19, %s31
      %s33 = ssub.s32 %s20, %s27
      %s34 = sor.u32 %s32, %s33
      %p35 = scmp.eq.s32.totalorder %s34, 0
      %s37 = sadd.s32 %s36, 1
      %s38 = scalar_select %p35, %s36, %s37
      %p41 = pneg %p35
      %p42 = scmp.eq.s32.totalorder %s12, 1
      %p43 = por %p41, %p42
      %p44 = scmp.ne.s32.totalorder %s36, %s39
      %p45 = scmp.eq.s32.totalorder %s12, 0
      %p46 = por %p44, %p45
      %p47 = scmp.ne.s32.totalorder %s36, %s39
      %p48 = scmp.eq.s32.totalorder %s17, 1
      %p49 = por %p47, %p48
      %p50 = scmp.ne.s32.totalorder %s39, %s40
      %p51 = scmp.eq.s32.totalorder %s17, 0
      %p52 = por %p50, %p51
      %p53 = scmp.ne.s32.totalorder %s39, %s40
      %p54 = scmp.eq.s32.totalorder %s18, 1
      %p55 = por %p53, %p54
      %p57 = scmp.ne.s32.totalorder %s40, %s56
      %p58 = scmp.eq.s32.totalorder %s18, 0
      %p59 = por %p57, %p58
      %s60 = ssub.s32 %s20, %s27
      %p61 = scmp.eq.s32.totalorder %s60, 0
      %s63 = sadd.s32 %s62, 1
      %s64 = scalar_select %p61, %s62, %s63
      %p67 = pneg %p61
      %p68 = scmp.eq.s32.totalorder %s12, 1
      %p69 = por %p67, %p68
      %p70 = scmp.ne.s32.totalorder %s62, %s65
      %p71 = scmp.eq.s32.totalorder %s12, 0
      %p72 = por %p70, %p71
      %p73 = scmp.ne.s32.totalorder %s62, %s65
      %p74 = scmp.eq.s32.totalorder %s17, 1
      %p75 = por %p73, %p74
      %p76 = scmp.ne.s32.totalorder %s65, %s66
      %p77 = scmp.eq.s32.totalorder %s17, 0
      %p78 = por %p76, %p77
      %p79 = scmp.ne.s32.totalorder %s65, %s66
      %p80 = scmp.eq.s32.totalorder %s18, 1
      %p81 = por %p79, %p80
      %p83 = scmp.ne.s32.totalorder %s66, %s82
      %p84 = scmp.eq.s32.totalorder %s18, 0
      %p85 = por %p83, %p84
      %s87 = sadd.s32 %s86, 1
      %p90 = scmp.eq.s32.totalorder %s12, 1
      %p91 = scmp.ne.s32.totalorder %s86, %s88
      %p92 = scmp.eq.s32.totalorder %s12, 0
      %p93 = por %p91, %p92
      %p94 = scmp.ne.s32.totalorder %s86, %s88
      %p95 = scmp.eq.s32.totalorder %s17, 1
      %p96 = por %p94, %p95
      %p97 = scmp.ne.s32.totalorder %s88, %s89
      %p98 = scmp.eq.s32.totalorder %s17, 0
      %p99 = por %p97, %p98
      %p100 = scmp.ne.s32.totalorder %s88, %s89
      %p101 = scmp.eq.s32.totalorder %s18, 1
      %p102 = por %p100, %p101
      %p104 = scmp.ne.s32.totalorder %s89, %s103
      %p105 = scmp.eq.s32.totalorder %s18, 0
      %p106 = por %p104, %p105
      %s107 = ssub.s32 %s19, %s31
      %p108 = scmp.eq.s32.totalorder %s107, 0
      %s110 = sadd.s32 %s109, 1
      %s111 = scalar_select %p108, %s109, %s110
      %p114 = pneg %p108
      %p115 = scmp.eq.s32.totalorder %s12, 1
      %p116 = por %p114, %p115
      %p117 = scmp.ne.s32.totalorder %s109, %s112
      %p118 = scmp.eq.s32.totalorder %s12, 0
      %p119 = por %p117, %p118
      %p120 = scmp.ne.s32.totalorder %s109, %s112
      %p121 = scmp.eq.s32.totalorder %s17, 1
      %p122 = por %p120, %p121
      %p123 = scmp.ne.s32.totalorder %s112, %s113
      %p124 = scmp.eq.s32.totalorder %s17, 0
      %p125 = por %p123, %p124
      %p126 = scmp.ne.s32.totalorder %s112, %s113
      %p127 = scmp.eq.s32.totalorder %s18, 1
      %p128 = por %p126, %p127
      %p130 = scmp.ne.s32.totalorder %s113, %s129
      %p131 = scmp.eq.s32.totalorder %s18, 0
      %p132 = por %p130, %p131
      %p133 = scmp.le.s32.totalorder 1, %s12
      %p134 = scmp.lt.s32.totalorder %s12, 3
      %p135 = pnand %p133, %p134
      %p136 = pneg %p135
      // Predicated region
      $region9: #{tpu_custom_call.1} parent=5 // pred_check
        _
      $region10: #{tpu_custom_call.1} parent=5 // pred_check_branch
        %138 = sbr.rel (%p135) target = $region12
      $region11: #{tpu_custom_call.1} parent=5 // pred_region
        %s139 = ssub.s32 %s12, 1
        // Predicated region
        $region13: #{tpu_custom_call.1} parent=11 // pred_check
          %p140 = pneg %p78
        $region14: #{tpu_custom_call.1} parent=11 // pred_check_branch
          %142 = sbr.rel (%p140) target = $region16
        $region15: #{tpu_custom_call.1} parent=11 // pred_region
          %s143 = smul.u32 32, %s22
          %p144 = scmp.lt.s32.totalorder %s143, 31
          %s145 = scalar_select %p144, %s143, 31
          %s146 = smul.addr %s145, 4
          %s147 = scalar_lea.vmem %s1, %s146
          %s148 = smul.u32 32, %s22
        $region16: #{tpu_custom_call.1} parent=11 // pred_fallthru
          _
        // Predicated region
        $region17: #{tpu_custom_call.1} parent=11 // pred_check
          %p149 = pneg %p99
        $region18: #{tpu_custom_call.1} parent=11 // pred_check_branch
          %151 = sbr.rel (%p149) target = $region20
        $region19: #{tpu_custom_call.1} parent=11 // pred_region
          _
        $region20: #{tpu_custom_call.1} parent=11 // pred_fallthru
          _
      $region12: #{tpu_custom_call.1} parent=5 // pred_fallthru
        _
      %p152 = scmp.lt.s32.totalorder %s12, 2
      // Predicated region
      $region21: #{tpu_custom_call.1} parent=5 // pred_check
        %p153 = pneg %p152
      $region22: #{tpu_custom_call.1} parent=5 // pred_check_branch
        %155 = sbr.rel (%p153) target = $region24
      $region23: #{tpu_custom_call.1} parent=5 // pred_region
        // Predicated region
        $region25: #{tpu_custom_call.1} parent=23 // pred_check
          %p156 = pneg %p46
        $region26: #{tpu_custom_call.1} parent=23 // pred_check_branch
          %158 = sbr.rel (%p156) target = $region28
        $region27: #{tpu_custom_call.1} parent=23 // pred_region
          %s159 = sand.u32 %s36, 1
          %s160 = scalar_lea.sflag [#allocation4], %s159
          %s161 = sand.u32 %s36, 1
          %s162 = smul.addr %s161, 256
          %s163 = scalar_lea.vmem [#allocation3], %s162
          %s164 = smul.u32 32, %s19
          %s165 = smul.u32 2, %s20
          %s167 = ssub.s32 4096, 4096
          %168 = vsyncadd %s160, %s167
          %s169 = smul.addr %s164, 2
          %s170 = sadd.s32 %s165, %s169
          %s171 = smul.addr %s170, 64
          %s172 = scalar_lea.hbm %s0, %s171
          %s173 = sshll.u32 %s163, 4
          %s174 = int_to_ptr.vmem [resolvable:$true] %s173
          %179 = dma.hbm_to_vmem [thread:$0]  %s172, 4096, %s174, %s160, 128, 128, 8
        $region28: #{tpu_custom_call.1} parent=23 // pred_fallthru
          _
      $region24: #{tpu_custom_call.1} parent=5 // pred_fallthru
        _
      %p180 = scmp.le.s32.totalorder 1, %s12
      %p181 = scmp.lt.s32.totalorder %s12, 3
      %p182 = pnand %p180, %p181
      %p183 = pneg %p182
      // Predicated region
      $region29: #{tpu_custom_call.1} parent=5 // pred_check
        _
      $region30: #{tpu_custom_call.1} parent=5 // pred_check_branch
        %185 = sbr.rel (%p182) target = $region32
      $region31: #{tpu_custom_call.1} parent=5 // pred_region
        %s186 = ssub.s32 %s12, 1
        %s187 = sand.u32 %s39, 1
        %s188 = scalar_lea.sflag [#allocation4], %s187
        %s189 = sand.u32 %s39, 1
        %s190 = smul.addr %s189, 256
        %s191 = scalar_lea.vmem [#allocation3], %s190
        // Predicated region
        $region33: #{tpu_custom_call.1} parent=31 // pred_check
          %p192 = pneg %p52
        $region34: #{tpu_custom_call.1} parent=31 // pred_check_branch
          %194 = sbr.rel (%p192) target = $region36
        $region35: #{tpu_custom_call.1} parent=31 // pred_region
          %195 = dma.done %s188, 4096
        $region36: #{tpu_custom_call.1} parent=31 // pred_fallthru
          _
        %s196 = sand.u32 %s39, 1
        %s197 = scalar_lea.sflag [#allocation4], %s196
        %s198 = sand.u32 %s39, 1
        %s199 = smul.addr %s198, 256
        %s200 = scalar_lea.vmem [#allocation3], %s199
        %p201 = pneg %p52
        %p202 = pneg %p49
        %s203 = smul.u32 32, %s22
        %p204 = scmp.lt.s32.totalorder %s203, 31
        %s205 = scalar_select %p204, %s203, 31
        %s206 = smul.addr %s205, 4
        %s207 = scalar_lea.vmem %s1, %s206
        %p208 = pneg %p78
        %p209 = pneg %p75
        %p210 = pneg %p99
        %p211 = pneg %p96
        %p212 = pneg %p125
        %p213 = pneg %p122
        %s214 = smul.u32 32, %s21
        %p215 = scmp.lt.s32.totalorder %s214, 63
        %s216 = scalar_select %p215, %s214, 63
        %s217 = smul.addr %s216, 8
        %s218 = scalar_lea.vmem %s3, %s217
        %s219 = smul.u32 32, %s21
        %s220 = smul.u32 2, %s22
        %s221 = smul.u32 32, %s22
        %p222 = scmp.lt.s32.totalorder %s221, 31
        %s223 = scalar_select %p222, %s221, 31
        %s224 = smul.addr %s223, 4
        %s225 = scalar_lea.vmem %s1, %s224
        %s226 = smul.u32 32, %s22
        %s227 = smul.u32 32, %s21
        %p228 = scmp.lt.s32.totalorder %s227, 63
        %s229 = scalar_select %p228, %s227, 63
        %s230 = smul.addr %s229, 8
        %s231 = scalar_lea.vmem %s3, %s230
        %s232 = smul.u32 32, %s21
        %p234 = scmp.eq.s32.totalorder %s22, 0
        // Predicated region
        $region37: #{tpu_custom_call.1} parent=31 // pred_check
          %p235 = pneg %p234
        $region38: #{tpu_custom_call.1} parent=31 // pred_check_branch
          %237 = sbr.rel (%p235) target = $region40
        $region39: #{tpu_custom_call.1} parent=31 // pred_region
          %vm238 = vcmask 523264
          %239 = vst.msk [vmem:[#allocation2] sm:$0xff] %vm238, 0.0
          %240 = vst.msk [vmem:[#allocation2 + $0x8] sm:$0xff] %vm238, 0.0
          %241 = vst.msk [vmem:[#allocation2 + $0x10] sm:$0xff] %vm238, 0.0
          %242 = vst.msk [vmem:[#allocation2 + $0x18] sm:$0xff] %vm238, 0.0
          %243 = vst.msk [vmem:[#allocation2 + $0x20] sm:$0xff] %vm238, 0.0
          %244 = vst.msk [vmem:[#allocation2 + $0x28] sm:$0xff] %vm238, 0.0
          %245 = vst.msk [vmem:[#allocation2 + $0x30] sm:$0xff] %vm238, 0.0
          %246 = vst.msk [vmem:[#allocation2 + $0x38] sm:$0xff] %vm238, 0.0
          %247 = vst.msk [vmem:[#allocation2 + $0x40] sm:$0xff] %vm238, 0.0
          %248 = vst.msk [vmem:[#allocation2 + $0x48] sm:$0xff] %vm238, 0.0
          %249 = vst.msk [vmem:[#allocation2 + $0x50] sm:$0xff] %vm238, 0.0
          %250 = vst.msk [vmem:[#allocation2 + $0x58] sm:$0xff] %vm238, 0.0
          %251 = vst.msk [vmem:[#allocation2 + $0x60] sm:$0xff] %vm238, 0.0
          %252 = vst.msk [vmem:[#allocation2 + $0x68] sm:$0xff] %vm238, 0.0
          %253 = vst.msk [vmem:[#allocation2 + $0x70] sm:$0xff] %vm238, 0.0
          %254 = vst.msk [vmem:[#allocation2 + $0x78] sm:$0xff] %vm238, 0.0
          %255 = vst.msk [vmem:[#allocation2 + $0x80] sm:$0xff] %vm238, 0.0
          %256 = vst.msk [vmem:[#allocation2 + $0x88] sm:$0xff] %vm238, 0.0
          %257 = vst.msk [vmem:[#allocation2 + $0x90] sm:$0xff] %vm238, 0.0
          %258 = vst.msk [vmem:[#allocation2 + $0x98] sm:$0xff] %vm238, 0.0
          %259 = vst.msk [vmem:[#allocation2 + $0xa0] sm:$0xff] %vm238, 0.0
          %260 = vst.msk [vmem:[#allocation2 + $0xa8] sm:$0xff] %vm238, 0.0
          %261 = vst.msk [vmem:[#allocation2 + $0xb0] sm:$0xff] %vm238, 0.0
          %262 = vst.msk [vmem:[#allocation2 + $0xb8] sm:$0xff] %vm238, 0.0
          %263 = vst.msk [vmem:[#allocation2 + $0xc0] sm:$0xff] %vm238, 0.0
          %264 = vst.msk [vmem:[#allocation2 + $0xc8] sm:$0xff] %vm238, 0.0
          %265 = vst.msk [vmem:[#allocation2 + $0xd0] sm:$0xff] %vm238, 0.0
          %266 = vst.msk [vmem:[#allocation2 + $0xd8] sm:$0xff] %vm238, 0.0
          %267 = vst.msk [vmem:[#allocation2 + $0xe0] sm:$0xff] %vm238, 0.0
          %268 = vst.msk [vmem:[#allocation2 + $0xe8] sm:$0xff] %vm238, 0.0
          %269 = vst.msk [vmem:[#allocation2 + $0xf0] sm:$0xff] %vm238, 0.0
          %270 = vst.msk [vmem:[#allocation2 + $0xf8] sm:$0xff] %vm238, 0.0
        $region40: #{tpu_custom_call.1} parent=31 // pred_fallthru
          _
        %v271 = vld [vmem:[#allocation2] sm:$0xff]
        %v272 = vld [vmem:[#allocation2 + $0x8] sm:$0xff]
        %v273 = vld [vmem:[#allocation2 + $0x10] sm:$0xff]
        %v274 = vld [vmem:[#allocation2 + $0x18] sm:$0xff]
        %v275 = vld [vmem:[#allocation2 + $0x20] sm:$0xff]
        %v276 = vld [vmem:[#allocation2 + $0x28] sm:$0xff]
        %v277 = vld [vmem:[#allocation2 + $0x30] sm:$0xff]
        %v278 = vld [vmem:[#allocation2 + $0x38] sm:$0xff]
        %v279 = vld [vmem:[#allocation2 + $0x40] sm:$0xff]
        %v280 = vld [vmem:[#allocation2 + $0x48] sm:$0xff]
        %v281 = vld [vmem:[#allocation2 + $0x50] sm:$0xff]
        %v282 = vld [vmem:[#allocation2 + $0x58] sm:$0xff]
        %v283 = vld [vmem:[#allocation2 + $0x60] sm:$0xff]
        %v284 = vld [vmem:[#allocation2 + $0x68] sm:$0xff]
        %v285 = vld [vmem:[#allocation2 + $0x70] sm:$0xff]
        %v286 = vld [vmem:[#allocation2 + $0x78] sm:$0xff]
        %v287 = vld [vmem:[#allocation2 + $0x80] sm:$0xff]
        %v288 = vld [vmem:[#allocation2 + $0x88] sm:$0xff]
        %v289 = vld [vmem:[#allocation2 + $0x90] sm:$0xff]
        %v290 = vld [vmem:[#allocation2 + $0x98] sm:$0xff]
        %v291 = vld [vmem:[#allocation2 + $0xa0] sm:$0xff]
        %v292 = vld [vmem:[#allocation2 + $0xa8] sm:$0xff]
        %v293 = vld [vmem:[#allocation2 + $0xb0] sm:$0xff]
        %v294 = vld [vmem:[#allocation2 + $0xb8] sm:$0xff]
        %v295 = vld [vmem:[#allocation2 + $0xc0] sm:$0xff]
        %v296 = vld [vmem:[#allocation2 + $0xc8] sm:$0xff]
        %v297 = vld [vmem:[#allocation2 + $0xd0] sm:$0xff]
        %v298 = vld [vmem:[#allocation2 + $0xd8] sm:$0xff]
        %v299 = vld [vmem:[#allocation2 + $0xe0] sm:$0xff]
        %v300 = vld [vmem:[#allocation2 + $0xe8] sm:$0xff]
        %v301 = vld [vmem:[#allocation2 + $0xf0] sm:$0xff]
        %v302 = vld [vmem:[#allocation2 + $0xf8] sm:$0xff]
        %v303 = vld [vmem:[%s191] sm:$0xff]
        %v304 = vld [vmem:[%s191 + $0x8] sm:$0xff]
        %v305 = vld [vmem:[%s191 + $0x10] sm:$0xff]
        %v306 = vld [vmem:[%s191 + $0x18] sm:$0xff]
        %v307 = vld [vmem:[%s191 + $0x20] sm:$0xff]
        %v308 = vld [vmem:[%s191 + $0x28] sm:$0xff]
        %v309 = vld [vmem:[%s191 + $0x30] sm:$0xff]
        %v310 = vld [vmem:[%s191 + $0x38] sm:$0xff]
        %v311 = vld [vmem:[%s191 + $0x40] sm:$0xff]
        %v312 = vld [vmem:[%s191 + $0x48] sm:$0xff]
        %v313 = vld [vmem:[%s191 + $0x50] sm:$0xff]
        %v314 = vld [vmem:[%s191 + $0x58] sm:$0xff]
        %v315 = vld [vmem:[%s191 + $0x60] sm:$0xff]
        %v316 = vld [vmem:[%s191 + $0x68] sm:$0xff]
        %v317 = vld [vmem:[%s191 + $0x70] sm:$0xff]
        %v318 = vld [vmem:[%s191 + $0x78] sm:$0xff]
        %v319 = vld [vmem:[%s191 + $0x80] sm:$0xff]
        %v320 = vld [vmem:[%s191 + $0x88] sm:$0xff]
        %v321 = vld [vmem:[%s191 + $0x90] sm:$0xff]
        %v322 = vld [vmem:[%s191 + $0x98] sm:$0xff]
        %v323 = vld [vmem:[%s191 + $0xa0] sm:$0xff]
        %v324 = vld [vmem:[%s191 + $0xa8] sm:$0xff]
        %v325 = vld [vmem:[%s191 + $0xb0] sm:$0xff]
        %v326 = vld [vmem:[%s191 + $0xb8] sm:$0xff]
        %v327 = vld [vmem:[%s191 + $0xc0] sm:$0xff]
        %v328 = vld [vmem:[%s191 + $0xc8] sm:$0xff]
        %v329 = vld [vmem:[%s191 + $0xd0] sm:$0xff]
        %v330 = vld [vmem:[%s191 + $0xd8] sm:$0xff]
        %v331 = vld [vmem:[%s191 + $0xe0] sm:$0xff]
        %v332 = vld [vmem:[%s191 + $0xe8] sm:$0xff]
        %v333 = vld [vmem:[%s191 + $0xf0] sm:$0xff]
        %v334 = vld [vmem:[%s191 + $0xf8] sm:$0xff]
        %v335 = vld [vmem:[%s225] sm:$0xf]
        %v336 = vld [vmem:[%s225 + $0x4] sm:$0xf]
        %v337 = vld [vmem:[%s225 + $0x8] sm:$0xf]
        %v338 = vld [vmem:[%s225 + $0xc] sm:$0xf]
        %v339 = vld [vmem:[%s225 + $0x10] sm:$0xf]
        %v340 = vld [vmem:[%s225 + $0x14] sm:$0xf]
        %v341 = vld [vmem:[%s225 + $0x18] sm:$0xf]
        %v342 = vld [vmem:[%s225 + $0x1c] sm:$0xf]
        %v343 = vld [vmem:[%s225 + $0x20] sm:$0xf]
        %v344 = vld [vmem:[%s225 + $0x24] sm:$0xf]
        %v345 = vld [vmem:[%s225 + $0x28] sm:$0xf]
        %v346 = vld [vmem:[%s225 + $0x2c] sm:$0xf]
        %v347 = vld [vmem:[%s225 + $0x30] sm:$0xf]
        %v348 = vld [vmem:[%s225 + $0x34] sm:$0xf]
        %v349 = vld [vmem:[%s225 + $0x38] sm:$0xf]
        %v350 = vld [vmem:[%s225 + $0x3c] sm:$0xf]
        %v351 = vld [vmem:[%s225 + $0x40] sm:$0xf]
        %v352 = vld [vmem:[%s225 + $0x44] sm:$0xf]
        %v353 = vld [vmem:[%s225 + $0x48] sm:$0xf]
        %v354 = vld [vmem:[%s225 + $0x4c] sm:$0xf]
        %v355 = vld [vmem:[%s225 + $0x50] sm:$0xf]
        %v356 = vld [vmem:[%s225 + $0x54] sm:$0xf]
        %v357 = vld [vmem:[%s225 + $0x58] sm:$0xf]
        %v358 = vld [vmem:[%s225 + $0x5c] sm:$0xf]
        %v359 = vld [vmem:[%s225 + $0x60] sm:$0xf]
        %v360 = vld [vmem:[%s225 + $0x64] sm:$0xf]
        %v361 = vld [vmem:[%s225 + $0x68] sm:$0xf]
        %v362 = vld [vmem:[%s225 + $0x6c] sm:$0xf]
        %v363 = vld [vmem:[%s225 + $0x70] sm:$0xf]
        %v364 = vld [vmem:[%s225 + $0x74] sm:$0xf]
        %v365 = vld [vmem:[%s225 + $0x78] sm:$0xf]
        %v366 = vld [vmem:[%s225 + $0x7c] sm:$0xf]
        %v399 = vunpack.c.l.b16 %v303
        %v400 = vunpack.c.h.b16 %v303
        %v401 = vunpack.c.l.b16 %v304
        %v402 = vunpack.c.h.b16 %v304
        %v403 = vunpack.c.l.b16 %v305
        %v404 = vunpack.c.h.b16 %v305
        %v405 = vunpack.c.l.b16 %v306
        %v406 = vunpack.c.h.b16 %v306
        %v407 = vunpack.c.l.b16 %v307
        %v408 = vunpack.c.h.b16 %v307
        %v409 = vunpack.c.l.b16 %v308
        %v410 = vunpack.c.h.b16 %v308
        %v411 = vunpack.c.l.b16 %v309
        %v412 = vunpack.c.h.b16 %v309
        %v413 = vunpack.c.l.b16 %v310
        %v414 = vunpack.c.h.b16 %v310
        %v415 = vunpack.c.l.b16 %v311
        %v416 = vunpack.c.h.b16 %v311
        %v417 = vunpack.c.l.b16 %v312
        %v418 = vunpack.c.h.b16 %v312
        %v419 = vunpack.c.l.b16 %v313
        %v420 = vunpack.c.h.b16 %v313
        %v421 = vunpack.c.l.b16 %v314
        %v422 = vunpack.c.h.b16 %v314
        %v423 = vunpack.c.l.b16 %v315
        %v424 = vunpack.c.h.b16 %v315
        %v425 = vunpack.c.l.b16 %v316
        %v426 = vunpack.c.h.b16 %v316
        %v427 = vunpack.c.l.b16 %v317
        %v428 = vunpack.c.h.b16 %v317
        %v429 = vunpack.c.l.b16 %v318
        %v430 = vunpack.c.h.b16 %v318
        %v431 = vunpack.c.l.b16 %v319
        %v432 = vunpack.c.h.b16 %v319
        %v433 = vunpack.c.l.b16 %v320
        %v434 = vunpack.c.h.b16 %v320
        %v435 = vunpack.c.l.b16 %v321
        %v436 = vunpack.c.h.b16 %v321
        %v437 = vunpack.c.l.b16 %v322
        %v438 = vunpack.c.h.b16 %v322
        %v439 = vunpack.c.l.b16 %v323
        %v440 = vunpack.c.h.b16 %v323
        %v441 = vunpack.c.l.b16 %v324
        %v442 = vunpack.c.h.b16 %v324
        %v443 = vunpack.c.l.b16 %v325
        %v444 = vunpack.c.h.b16 %v325
        %v445 = vunpack.c.l.b16 %v326
        %v446 = vunpack.c.h.b16 %v326
        %v447 = vunpack.c.l.b16 %v327
        %v448 = vunpack.c.h.b16 %v327
        %v449 = vunpack.c.l.b16 %v328
        %v450 = vunpack.c.h.b16 %v328
        %v451 = vunpack.c.l.b16 %v329
        %v452 = vunpack.c.h.b16 %v329
        %v453 = vunpack.c.l.b16 %v330
        %v454 = vunpack.c.h.b16 %v330
        %v455 = vunpack.c.l.b16 %v331
        %v456 = vunpack.c.h.b16 %v331
        %v457 = vunpack.c.l.b16 %v332
        %v458 = vunpack.c.h.b16 %v332
        %v459 = vunpack.c.l.b16 %v333
        %v460 = vunpack.c.h.b16 %v333
        %v461 = vunpack.c.l.b16 %v334
        %v462 = vunpack.c.h.b16 %v334
        %v463 = vpack.c.b16 %v401, %v399
        %v464 = vpack.c.b16 %v402, %v400
        %v465 = vpack.c.b16 %v405, %v403
        %v466 = vpack.c.b16 %v406, %v404
        %v467 = vpack.c.b16 %v409, %v407
        %v468 = vpack.c.b16 %v410, %v408
        %v469 = vpack.c.b16 %v413, %v411
        %v470 = vpack.c.b16 %v414, %v412
        %v471 = vpack.c.b16 %v417, %v415
        %v472 = vpack.c.b16 %v418, %v416
        %v473 = vpack.c.b16 %v421, %v419
        %v474 = vpack.c.b16 %v422, %v420
        %v475 = vpack.c.b16 %v425, %v423
        %v476 = vpack.c.b16 %v426, %v424
        %v477 = vpack.c.b16 %v429, %v427
        %v478 = vpack.c.b16 %v430, %v428
        %v479 = vpack.c.b16 %v433, %v431
        %v480 = vpack.c.b16 %v434, %v432
        %v481 = vpack.c.b16 %v437, %v435
        %v482 = vpack.c.b16 %v438, %v436
        %v483 = vpack.c.b16 %v441, %v439
        %v484 = vpack.c.b16 %v442, %v440
        %v485 = vpack.c.b16 %v445, %v443
        %v486 = vpack.c.b16 %v446, %v444
        %v487 = vpack.c.b16 %v449, %v447
        %v488 = vpack.c.b16 %v450, %v448
        %v489 = vpack.c.b16 %v453, %v451
        %v490 = vpack.c.b16 %v454, %v452
        %v491 = vpack.c.b16 %v457, %v455
        %v492 = vpack.c.b16 %v458, %v456
        %v493 = vpack.c.b16 %v461, %v459
        %v494 = vpack.c.b16 %v462, %v460
        %v559 = vunpack.c.l.b16 %v335
        %v560 = vunpack.c.l.b16 %v336
        %v561 = vunpack.c.l.b16 %v337
        %v562 = vunpack.c.l.b16 %v338
        %v563 = vunpack.c.l.b16 %v339
        %v564 = vunpack.c.l.b16 %v340
        %v565 = vunpack.c.l.b16 %v341
        %v566 = vunpack.c.l.b16 %v342
        %v567 = vunpack.c.l.b16 %v343
        %v568 = vunpack.c.l.b16 %v344
        %v569 = vunpack.c.l.b16 %v345
        %v570 = vunpack.c.l.b16 %v346
        %v571 = vunpack.c.l.b16 %v347
        %v572 = vunpack.c.l.b16 %v348
        %v573 = vunpack.c.l.b16 %v349
        %v574 = vunpack.c.l.b16 %v350
        %v575 = vunpack.c.l.b16 %v351
        %v576 = vunpack.c.l.b16 %v352
        %v577 = vunpack.c.l.b16 %v353
        %v578 = vunpack.c.l.b16 %v354
        %v579 = vunpack.c.l.b16 %v355
        %v580 = vunpack.c.l.b16 %v356
        %v581 = vunpack.c.l.b16 %v357
        %v582 = vunpack.c.l.b16 %v358
        %v583 = vunpack.c.l.b16 %v359
        %v584 = vunpack.c.l.b16 %v360
        %v585 = vunpack.c.l.b16 %v361
        %v586 = vunpack.c.l.b16 %v362
        %v587 = vunpack.c.l.b16 %v363
        %v588 = vunpack.c.l.b16 %v364
        %v589 = vunpack.c.l.b16 %v365
        %v590 = vunpack.c.l.b16 %v366
        %v591 = vpack.c.b16 %v560, %v559
        %v592 = vpack.c.b16 %v562, %v561
        %v593 = vpack.c.b16 %v564, %v563
        %v594 = vpack.c.b16 %v566, %v565
        %v595 = vpack.c.b16 %v568, %v567
        %v596 = vpack.c.b16 %v570, %v569
        %v597 = vpack.c.b16 %v572, %v571
        %v598 = vpack.c.b16 %v574, %v573
        %v599 = vpack.c.b16 %v576, %v575
        %v600 = vpack.c.b16 %v578, %v577
        %v601 = vpack.c.b16 %v580, %v579
        %v602 = vpack.c.b16 %v582, %v581
        %v603 = vpack.c.b16 %v584, %v583
        %v604 = vpack.c.b16 %v586, %v585
        %v605 = vpack.c.b16 %v588, %v587
        %v606 = vpack.c.b16 %v590, %v589
        %623 = vmatprep.subr.bf16.mxu0 0
        %624 = vmatpush1.bf16.msra.mxu0 %v591
        %625 = vmatprep.subr.bf16.mxu0 0
        %626 = vmatpush1.bf16.msra.mxu0 %v592
        %627 = vmatprep.subr.bf16.mxu0 0
        %628 = vmatpush1.bf16.msra.mxu0 %v593
        %629 = vmatprep.subr.bf16.mxu0 0
        %630 = vmatpush1.bf16.msra.mxu0 %v594
        %631 = vmatprep.subr.bf16.mxu0 0
        %632 = vmatpush1.bf16.msra.mxu0 %v595
        %633 = vmatprep.subr.bf16.mxu0 0
        %634 = vmatpush1.bf16.msra.mxu0 %v596
        %635 = vmatprep.subr.bf16.mxu0 0
        %636 = vmatpush1.bf16.msra.mxu0 %v597
        %637 = vmatprep.subr.bf16.mxu0 0
        %638 = vmatpush1.bf16.msra.mxu0 %v598
        %639 = vmatprep.subr.bf16.mxu0 0
        %640 = vmatpush1.bf16.msra.mxu0 %v599
        %641 = vmatprep.subr.bf16.mxu0 0
        %642 = vmatpush1.bf16.msra.mxu0 %v600
        %643 = vmatprep.subr.bf16.mxu0 0
        %644 = vmatpush1.bf16.msra.mxu0 %v601
        %645 = vmatprep.subr.bf16.mxu0 0
        %646 = vmatpush1.bf16.msra.mxu0 %v602
        %647 = vmatprep.subr.bf16.mxu0 0
        %648 = vmatpush1.bf16.msra.mxu0 %v603
        %649 = vmatprep.subr.bf16.mxu0 0
        %650 = vmatpush1.bf16.msra.mxu0 %v604
        %651 = vmatprep.subr.bf16.mxu0 0
        %652 = vmatpush1.bf16.msra.mxu0 %v605
        %653 = vmatprep.subr.bf16.mxu0 0
        %654 = vmatpush1.bf16.msra.mxu0 %v606
        %655 = vmatprep.mubr.bf16.mxu0 %v464
        %656 = vmatmul.mubr.bf16.gmra.mrb[0].mxu0 %v463
        %v657 = vpop.f32.mrb[0].mxu0
        %v658 = vadd.f32 0.0, %v657
        %v659 = vpop.f32.mrb[0].mxu0
        %v660 = vpop.f32.mrb[0].mxu0
        %v661 = vadd.f32 0.0, %v660
        %v662 = vpop.f32.mrb[0].mxu0
        %663 = vmatprep.mubr.bf16.mxu0 %v466
        %664 = vmatmul.mubr.bf16.gmra.mrb[0].mxu0 %v465
        %v665 = vpop.f32.mrb[0].mxu0
        %v666 = vadd.f32 0.0, %v665
        %v667 = vpop.f32.mrb[0].mxu0
        %v668 = vpop.f32.mrb[0].mxu0
        %v669 = vadd.f32 0.0, %v668
        %v670 = vpop.f32.mrb[0].mxu0
        %671 = vmatprep.mubr.bf16.mxu0 %v468
        %672 = vmatmul.mubr.bf16.gmra.mrb[0].mxu0 %v467
        %v673 = vpop.f32.mrb[0].mxu0
        %v674 = vadd.f32 0.0, %v673
        %v675 = vpop.f32.mrb[0].mxu0
        %v676 = vpop.f32.mrb[0].mxu0
        %v677 = vadd.f32 0.0, %v676
        %v678 = vpop.f32.mrb[0].mxu0
        %679 = vmatprep.mubr.bf16.mxu0 %v470
        %680 = vmatmul.mubr.bf16.gmra.mrb[0].mxu0 %v469
        %v681 = vpop.f32.mrb[0].mxu0
        %v682 = vadd.f32 0.0, %v681
        %v683 = vpop.f32.mrb[0].mxu0
        %v684 = vpop.f32.mrb[0].mxu0
        %v685 = vadd.f32 0.0, %v684
        %v686 = vpop.f32.mrb[0].mxu0
        %687 = vmatprep.mubr.bf16.mxu0 %v472
        %688 = vmatmul.mubr.bf16.gmra.mrb[0].mxu0 %v471
        %v689 = vpop.f32.mrb[0].mxu0
        %v690 = vadd.f32 0.0, %v689
        %v691 = vpop.f32.mrb[0].mxu0
        %v692 = vpop.f32.mrb[0].mxu0
        %v693 = vadd.f32 0.0, %v692
        %v694 = vpop.f32.mrb[0].mxu0
        %695 = vmatprep.mubr.bf16.mxu0 %v474
        %696 = vmatmul.mubr.bf16.gmra.mrb[0].mxu0 %v473
        %v697 = vpop.f32.mrb[0].mxu0
        %v698 = vadd.f32 0.0, %v697
        %v699 = vpop.f32.mrb[0].mxu0
        %v700 = vpop.f32.mrb[0].mxu0
        %v701 = vadd.f32 0.0, %v700
        %v702 = vpop.f32.mrb[0].mxu0
        %703 = vmatprep.mubr.bf16.mxu0 %v476
        %704 = vmatmul.mubr.bf16.gmra.mrb[0].mxu0 %v475
        %v705 = vpop.f32.mrb[0].mxu0
        %v706 = vadd.f32 0.0, %v705
        %v707 = vpop.f32.mrb[0].mxu0
        %v708 = vpop.f32.mrb[0].mxu0
        %v709 = vadd.f32 0.0, %v708
        %v710 = vpop.f32.mrb[0].mxu0
        %711 = vmatprep.mubr.bf16.mxu0 %v478
        %712 = vmatmul.mubr.bf16.gmra.mrb[0].mxu0 %v477
        %v713 = vpop.f32.mrb[0].mxu0
        %v714 = vadd.f32 0.0, %v713
        %v715 = vpop.f32.mrb[0].mxu0
        %v716 = vpop.f32.mrb[0].mxu0
        %v717 = vadd.f32 0.0, %v716
        %v718 = vpop.f32.mrb[0].mxu0
        %719 = vmatprep.mubr.bf16.mxu0 %v480
        %720 = vmatmul.mubr.bf16.gmra.mrb[0].mxu0 %v479
        %v721 = vpop.f32.mrb[0].mxu0
        %v722 = vadd.f32 0.0, %v721
        %v723 = vpop.f32.mrb[0].mxu0
        %v724 = vpop.f32.mrb[0].mxu0
        %v725 = vadd.f32 0.0, %v724
        %v726 = vpop.f32.mrb[0].mxu0
        %727 = vmatprep.mubr.bf16.mxu0 %v482
        %728 = vmatmul.mubr.bf16.gmra.mrb[0].mxu0 %v481
        %v729 = vpop.f32.mrb[0].mxu0
        %v730 = vadd.f32 0.0, %v729
        %v731 = vpop.f32.mrb[0].mxu0
        %v732 = vpop.f32.mrb[0].mxu0
        %v733 = vadd.f32 0.0, %v732
        %v734 = vpop.f32.mrb[0].mxu0
        %735 = vmatprep.mubr.bf16.mxu0 %v484
        %736 = vmatmul.mubr.bf16.gmra.mrb[0].mxu0 %v483
        %v737 = vpop.f32.mrb[0].mxu0
        %v738 = vadd.f32 0.0, %v737
        %v739 = vpop.f32.mrb[0].mxu0
        %v740 = vpop.f32.mrb[0].mxu0
        %v741 = vadd.f32 0.0, %v740
        %v742 = vpop.f32.mrb[0].mxu0
        %743 = vmatprep.mubr.bf16.mxu0 %v486
        %744 = vmatmul.mubr.bf16.gmra.mrb[0].mxu0 %v485
        %v745 = vpop.f32.mrb[0].mxu0
        %v746 = vadd.f32 0.0, %v745
        %v747 = vpop.f32.mrb[0].mxu0
        %v748 = vpop.f32.mrb[0].mxu0
        %v749 = vadd.f32 0.0, %v748
        %v750 = vpop.f32.mrb[0].mxu0
        %751 = vmatprep.mubr.bf16.mxu0 %v488
        %752 = vmatmul.mubr.bf16.gmra.mrb[0].mxu0 %v487
        %v753 = vpop.f32.mrb[0].mxu0
        %v754 = vadd.f32 0.0, %v753
        %v755 = vpop.f32.mrb[0].mxu0
        %v756 = vpop.f32.mrb[0].mxu0
        %v757 = vadd.f32 0.0, %v756
        %v758 = vpop.f32.mrb[0].mxu0
        %759 = vmatprep.mubr.bf16.mxu0 %v490
        %760 = vmatmul.mubr.bf16.gmra.mrb[0].mxu0 %v489
        %v761 = vpop.f32.mrb[0].mxu0
        %v762 = vadd.f32 0.0, %v761
        %v763 = vpop.f32.mrb[0].mxu0
        %v764 = vpop.f32.mrb[0].mxu0
        %v765 = vadd.f32 0.0, %v764
        %v766 = vpop.f32.mrb[0].mxu0
        %767 = vmatprep.mubr.bf16.mxu0 %v492
        %768 = vmatmul.mubr.bf16.gmra.mrb[0].mxu0 %v491
        %v769 = vpop.f32.mrb[0].mxu0
        %v770 = vadd.f32 0.0, %v769
        %v771 = vpop.f32.mrb[0].mxu0
        %v772 = vpop.f32.mrb[0].mxu0
        %v773 = vadd.f32 0.0, %v772
        %v774 = vpop.f32.mrb[0].mxu0
        %775 = vmatprep.mubr.bf16.mxu0 %v494
        %776 = vmatmul.mubr.bf16.gmra.mrb[0].mxu0 %v493
        %v777 = vpop.f32.mrb[0].mxu0
        %v778 = vadd.f32 0.0, %v777
        %v779 = vpop.f32.mrb[0].mxu0
        %v780 = vpop.f32.mrb[0].mxu0
        %v781 = vadd.f32 0.0, %v780
        %v782 = vpop.f32.mrb[0].mxu0
        %783 = vdwg.mxu0
        %v784 = vadd.f32 %v271, %v658
        %v785 = vadd.f32 %v272, %v661
        %v786 = vadd.f32 %v273, %v666
        %v787 = vadd.f32 %v274, %v669
        %v788 = vadd.f32 %v275, %v674
        %v789 = vadd.f32 %v276, %v677
        %v790 = vadd.f32 %v277, %v682
        %v791 = vadd.f32 %v278, %v685
        %v792 = vadd.f32 %v279, %v690
        %v793 = vadd.f32 %v280, %v693
        %v794 = vadd.f32 %v281, %v698
        %v795 = vadd.f32 %v282, %v701
        %v796 = vadd.f32 %v283, %v706
        %v797 = vadd.f32 %v284, %v709
        %v798 = vadd.f32 %v285, %v714
        %v799 = vadd.f32 %v286, %v717
        %v800 = vadd.f32 %v287, %v722
        %v801 = vadd.f32 %v288, %v725
        %v802 = vadd.f32 %v289, %v730
        %v803 = vadd.f32 %v290, %v733
        %v804 = vadd.f32 %v291, %v738
        %v805 = vadd.f32 %v292, %v741
        %v806 = vadd.f32 %v293, %v746
        %v807 = vadd.f32 %v294, %v749
        %v808 = vadd.f32 %v295, %v754
        %v809 = vadd.f32 %v296, %v757
        %v810 = vadd.f32 %v297, %v762
        %v811 = vadd.f32 %v298, %v765
        %v812 = vadd.f32 %v299, %v770
        %v813 = vadd.f32 %v300, %v773
        %v814 = vadd.f32 %v301, %v778
        %v815 = vadd.f32 %v302, %v781
        %vm816 = vcmask 523264
        %817 = vst.msk [vmem:[#allocation2] sm:$0xff] %vm816, %v784
        %818 = vst.msk [vmem:[#allocation2 + $0x8] sm:$0xff] %vm816, %v785
        %819 = vst.msk [vmem:[#allocation2 + $0x10] sm:$0xff] %vm816, %v786
        %820 = vst.msk [vmem:[#allocation2 + $0x18] sm:$0xff] %vm816, %v787
        %821 = vst.msk [vmem:[#allocation2 + $0x20] sm:$0xff] %vm816, %v788
        %822 = vst.msk [vmem:[#allocation2 + $0x28] sm:$0xff] %vm816, %v789
        %823 = vst.msk [vmem:[#allocation2 + $0x30] sm:$0xff] %vm816, %v790
        %824 = vst.msk [vmem:[#allocation2 + $0x38] sm:$0xff] %vm816, %v791
        %825 = vst.msk [vmem:[#allocation2 + $0x40] sm:$0xff] %vm816, %v792
        %826 = vst.msk [vmem:[#allocation2 + $0x48] sm:$0xff] %vm816, %v793
        %827 = vst.msk [vmem:[#allocation2 + $0x50] sm:$0xff] %vm816, %v794
        %828 = vst.msk [vmem:[#allocation2 + $0x58] sm:$0xff] %vm816, %v795
        %829 = vst.msk [vmem:[#allocation2 + $0x60] sm:$0xff] %vm816, %v796
        %830 = vst.msk [vmem:[#allocation2 + $0x68] sm:$0xff] %vm816, %v797
        %831 = vst.msk [vmem:[#allocation2 + $0x70] sm:$0xff] %vm816, %v798
        %832 = vst.msk [vmem:[#allocation2 + $0x78] sm:$0xff] %vm816, %v799
        %833 = vst.msk [vmem:[#allocation2 + $0x80] sm:$0xff] %vm816, %v800
        %834 = vst.msk [vmem:[#allocation2 + $0x88] sm:$0xff] %vm816, %v801
        %835 = vst.msk [vmem:[#allocation2 + $0x90] sm:$0xff] %vm816, %v802
        %836 = vst.msk [vmem:[#allocation2 + $0x98] sm:$0xff] %vm816, %v803
        %837 = vst.msk [vmem:[#allocation2 + $0xa0] sm:$0xff] %vm816, %v804
        %838 = vst.msk [vmem:[#allocation2 + $0xa8] sm:$0xff] %vm816, %v805
        %839 = vst.msk [vmem:[#allocation2 + $0xb0] sm:$0xff] %vm816, %v806
        %840 = vst.msk [vmem:[#allocation2 + $0xb8] sm:$0xff] %vm816, %v807
        %841 = vst.msk [vmem:[#allocation2 + $0xc0] sm:$0xff] %vm816, %v808
        %842 = vst.msk [vmem:[#allocation2 + $0xc8] sm:$0xff] %vm816, %v809
        %843 = vst.msk [vmem:[#allocation2 + $0xd0] sm:$0xff] %vm816, %v810
        %844 = vst.msk [vmem:[#allocation2 + $0xd8] sm:$0xff] %vm816, %v811
        %845 = vst.msk [vmem:[#allocation2 + $0xe0] sm:$0xff] %vm816, %v812
        %846 = vst.msk [vmem:[#allocation2 + $0xe8] sm:$0xff] %vm816, %v813
        %847 = vst.msk [vmem:[#allocation2 + $0xf0] sm:$0xff] %vm816, %v814
        %848 = vst.msk [vmem:[#allocation2 + $0xf8] sm:$0xff] %vm816, %v815
        // Predicated region
        $region41: #{tpu_custom_call.1} parent=31 // pred_check
          %p849 = pneg %p234
        $region42: #{tpu_custom_call.1} parent=31 // pred_check_branch
          %851 = sbr.rel (%p849) target = $region44
        $region43: #{tpu_custom_call.1} parent=31 // pred_region
          %v852 = vld [vmem:[#allocation2] sm:$0xff]
          %v853 = vld [vmem:[#allocation2 + $0x8] sm:$0xff]
          %v854 = vld [vmem:[#allocation2 + $0x10] sm:$0xff]
          %v855 = vld [vmem:[#allocation2 + $0x18] sm:$0xff]
          %v856 = vld [vmem:[#allocation2 + $0x20] sm:$0xff]
          %v857 = vld [vmem:[#allocation2 + $0x28] sm:$0xff]
          %v858 = vld [vmem:[#allocation2 + $0x30] sm:$0xff]
          %v859 = vld [vmem:[#allocation2 + $0x38] sm:$0xff]
          %v860 = vld [vmem:[#allocation2 + $0x40] sm:$0xff]
          %v861 = vld [vmem:[#allocation2 + $0x48] sm:$0xff]
          %v862 = vld [vmem:[#allocation2 + $0x50] sm:$0xff]
          %v863 = vld [vmem:[#allocation2 + $0x58] sm:$0xff]
          %v864 = vld [vmem:[#allocation2 + $0x60] sm:$0xff]
          %v865 = vld [vmem:[#allocation2 + $0x68] sm:$0xff]
          %v866 = vld [vmem:[#allocation2 + $0x70] sm:$0xff]
          %v867 = vld [vmem:[#allocation2 + $0x78] sm:$0xff]
          %v868 = vld [vmem:[#allocation2 + $0x80] sm:$0xff]
          %v869 = vld [vmem:[#allocation2 + $0x88] sm:$0xff]
          %v870 = vld [vmem:[#allocation2 + $0x90] sm:$0xff]
          %v871 = vld [vmem:[#allocation2 + $0x98] sm:$0xff]
          %v872 = vld [vmem:[#allocation2 + $0xa0] sm:$0xff]
          %v873 = vld [vmem:[#allocation2 + $0xa8] sm:$0xff]
          %v874 = vld [vmem:[#allocation2 + $0xb0] sm:$0xff]
          %v875 = vld [vmem:[#allocation2 + $0xb8] sm:$0xff]
          %v876 = vld [vmem:[#allocation2 + $0xc0] sm:$0xff]
          %v877 = vld [vmem:[#allocation2 + $0xc8] sm:$0xff]
          %v878 = vld [vmem:[#allocation2 + $0xd0] sm:$0xff]
          %v879 = vld [vmem:[#allocation2 + $0xd8] sm:$0xff]
          %v880 = vld [vmem:[#allocation2 + $0xe0] sm:$0xff]
          %v881 = vld [vmem:[#allocation2 + $0xe8] sm:$0xff]
          %v882 = vld [vmem:[#allocation2 + $0xf0] sm:$0xff]
          %v883 = vld [vmem:[#allocation2 + $0xf8] sm:$0xff]
          %v884 = vld [vmem:[%s2] sm:$0x1]
          %v886 = vlaneseq
          %v887 = vshrl.u32 %v886, 7
          %v888 = vsub.s32 0, %v887
          %v889 = vrot.slane %v884, %v888
          %v891 = vadd.f32 %v852, %v889
          %v892 = vadd.f32 %v853, %v889
          %v893 = vadd.f32 %v854, %v889
          %v894 = vadd.f32 %v855, %v889
          %v895 = vadd.f32 %v856, %v889
          %v896 = vadd.f32 %v857, %v889
          %v897 = vadd.f32 %v858, %v889
          %v898 = vadd.f32 %v859, %v889
          %v899 = vadd.f32 %v860, %v889
          %v900 = vadd.f32 %v861, %v889
          %v901 = vadd.f32 %v862, %v889
          %v902 = vadd.f32 %v863, %v889
          %v903 = vadd.f32 %v864, %v889
          %v904 = vadd.f32 %v865, %v889
          %v905 = vadd.f32 %v866, %v889
          %v906 = vadd.f32 %v867, %v889
          %v907 = vadd.f32 %v868, %v889
          %v908 = vadd.f32 %v869, %v889
          %v909 = vadd.f32 %v870, %v889
          %v910 = vadd.f32 %v871, %v889
          %v911 = vadd.f32 %v872, %v889
          %v912 = vadd.f32 %v873, %v889
          %v913 = vadd.f32 %v874, %v889
          %v914 = vadd.f32 %v875, %v889
          %v915 = vadd.f32 %v876, %v889
          %v916 = vadd.f32 %v877, %v889
          %v917 = vadd.f32 %v878, %v889
          %v918 = vadd.f32 %v879, %v889
          %v919 = vadd.f32 %v880, %v889
          %v920 = vadd.f32 %v881, %v889
          %v921 = vadd.f32 %v882, %v889
          %v922 = vadd.f32 %v883, %v889
          %v923 = vmax.f32 %v891, 0.0
          %v924 = vmax.f32 %v892, 0.0
          %v925 = vmax.f32 %v893, 0.0
          %v926 = vmax.f32 %v894, 0.0
          %v927 = vmax.f32 %v895, 0.0
          %v928 = vmax.f32 %v896, 0.0
          %v929 = vmax.f32 %v897, 0.0
          %v930 = vmax.f32 %v898, 0.0
          %v931 = vmax.f32 %v899, 0.0
          %v932 = vmax.f32 %v900, 0.0
          %v933 = vmax.f32 %v901, 0.0
          %v934 = vmax.f32 %v902, 0.0
          %v935 = vmax.f32 %v903, 0.0
          %v936 = vmax.f32 %v904, 0.0
          %v937 = vmax.f32 %v905, 0.0
          %v938 = vmax.f32 %v906, 0.0
          %v939 = vmax.f32 %v907, 0.0
          %v940 = vmax.f32 %v908, 0.0
          %v941 = vmax.f32 %v909, 0.0
          %v942 = vmax.f32 %v910, 0.0
          %v943 = vmax.f32 %v911, 0.0
          %v944 = vmax.f32 %v912, 0.0
          %v945 = vmax.f32 %v913, 0.0
          %v946 = vmax.f32 %v914, 0.0
          %v947 = vmax.f32 %v915, 0.0
          %v948 = vmax.f32 %v916, 0.0
          %v949 = vmax.f32 %v917, 0.0
          %v950 = vmax.f32 %v918, 0.0
          %v951 = vmax.f32 %v919, 0.0
          %v952 = vmax.f32 %v920, 0.0
          %v953 = vmax.f32 %v921, 0.0
          %v954 = vmax.f32 %v922, 0.0
          %955 = vst.msk [vmem:[%s231] sm:$0xff] %vm816, %v923
          %956 = vst.msk [vmem:[%s231 + $0x8] sm:$0xff] %vm816, %v924
          %957 = vst.msk [vmem:[%s231 + $0x10] sm:$0xff] %vm816, %v925
          %958 = vst.msk [vmem:[%s231 + $0x18] sm:$0xff] %vm816, %v926
          %959 = vst.msk [vmem:[%s231 + $0x20] sm:$0xff] %vm816, %v927
          %960 = vst.msk [vmem:[%s231 + $0x28] sm:$0xff] %vm816, %v928
          %961 = vst.msk [vmem:[%s231 + $0x30] sm:$0xff] %vm816, %v929
          %962 = vst.msk [vmem:[%s231 + $0x38] sm:$0xff] %vm816, %v930
          %963 = vst.msk [vmem:[%s231 + $0x40] sm:$0xff] %vm816, %v931
          %964 = vst.msk [vmem:[%s231 + $0x48] sm:$0xff] %vm816, %v932
          %965 = vst.msk [vmem:[%s231 + $0x50] sm:$0xff] %vm816, %v933
          %966 = vst.msk [vmem:[%s231 + $0x58] sm:$0xff] %vm816, %v934
          %967 = vst.msk [vmem:[%s231 + $0x60] sm:$0xff] %vm816, %v935
          %968 = vst.msk [vmem:[%s231 + $0x68] sm:$0xff] %vm816, %v936
          %969 = vst.msk [vmem:[%s231 + $0x70] sm:$0xff] %vm816, %v937
          %970 = vst.msk [vmem:[%s231 + $0x78] sm:$0xff] %vm816, %v938
          %971 = vst.msk [vmem:[%s231 + $0x80] sm:$0xff] %vm816, %v939
          %972 = vst.msk [vmem:[%s231 + $0x88] sm:$0xff] %vm816, %v940
          %973 = vst.msk [vmem:[%s231 + $0x90] sm:$0xff] %vm816, %v941
          %974 = vst.msk [vmem:[%s231 + $0x98] sm:$0xff] %vm816, %v942
          %975 = vst.msk [vmem:[%s231 + $0xa0] sm:$0xff] %vm816, %v943
          %976 = vst.msk [vmem:[%s231 + $0xa8] sm:$0xff] %vm816, %v944
          %977 = vst.msk [vmem:[%s231 + $0xb0] sm:$0xff] %vm816, %v945
          %978 = vst.msk [vmem:[%s231 + $0xb8] sm:$0xff] %vm816, %v946
          %979 = vst.msk [vmem:[%s231 + $0xc0] sm:$0xff] %vm816, %v947
          %980 = vst.msk [vmem:[%s231 + $0xc8] sm:$0xff] %vm816, %v948
          %981 = vst.msk [vmem:[%s231 + $0xd0] sm:$0xff] %vm816, %v949
          %982 = vst.msk [vmem:[%s231 + $0xd8] sm:$0xff] %vm816, %v950
          %983 = vst.msk [vmem:[%s231 + $0xe0] sm:$0xff] %vm816, %v951
          %984 = vst.msk [vmem:[%s231 + $0xe8] sm:$0xff] %vm816, %v952
          %985 = vst.msk [vmem:[%s231 + $0xf0] sm:$0xff] %vm816, %v953
          %986 = vst.msk [vmem:[%s231 + $0xf8] sm:$0xff] %vm816, %v954
        $region44: #{tpu_custom_call.1} parent=31 // pred_fallthru
          _
        %s987 = smul.u32 32, %s21
        %p988 = scmp.lt.s32.totalorder %s987, 63
        %s989 = scalar_select %p988, %s987, 63
        %s990 = smul.addr %s989, 8
        %s991 = scalar_lea.vmem %s3, %s990
        // Predicated region
        $region45: #{tpu_custom_call.1} parent=31 // pred_check
          %p992 = pneg %p122
        $region46: #{tpu_custom_call.1} parent=31 // pred_check_branch
          %994 = sbr.rel (%p992) target = $region48
        $region47: #{tpu_custom_call.1} parent=31 // pred_region
          %s995 = smul.u32 32, %s21
        $region48: #{tpu_custom_call.1} parent=31 // pred_fallthru
          _
      $region32: #{tpu_custom_call.1} parent=5 // pred_fallthru
        _
      %p996 = scmp.le.s32.totalorder 2, %s12
      // Predicated region
      $region49: #{tpu_custom_call.1} parent=5 // pred_check
        %p997 = pneg %p996
      $region50: #{tpu_custom_call.1} parent=5 // pred_check_branch
        %999 = sbr.rel (%p997) target = $region52
      $region51: #{tpu_custom_call.1} parent=5 // pred_region
        %s1000 = ssub.s32 %s12, 2
        // Predicated region
        $region53: #{tpu_custom_call.1} parent=51 // pred_check
          %p1001 = pneg %p128
        $region54: #{tpu_custom_call.1} parent=51 // pred_check_branch
          %1003 = sbr.rel (%p1001) target = $region56
        $region55: #{tpu_custom_call.1} parent=51 // pred_region
          %s1004 = smul.u32 32, %s23
          %p1005 = scmp.lt.s32.totalorder %s1004, 63
          %s1006 = scalar_select %p1005, %s1004, 63
          %s1007 = smul.addr %s1006, 8
          %s1008 = scalar_lea.vmem %s3, %s1007
        $region56: #{tpu_custom_call.1} parent=51 // pred_fallthru
          _
      $region52: #{tpu_custom_call.1} parent=5 // pred_fallthru
        _
    $region6: #{tpu_custom_call.1} parent=1 // loop_footer
      %s16 = sadd.s32 1, %s12
    $region7: #{tpu_custom_call.1} parent=1 // loop_footer_branch
      %11 = sbr.rel target = $region3
    $region8: #{tpu_custom_call.1} parent=1 // loop_exit
      _
    %1009 = vsyncpa [#allocation4], 1
    %s1010 = scalar_lea.sflag [#allocation4], 1
    %1011 = vsyncpa %s1010, 1

</llo_original>
